<compile_context>
chip_gen: v7x
topology: tpu7x:2x2x1
jax: 0.10.0
libtpu: 0.0.40
codegen_flags: <defaults>
</compile_context>

<pallas_src>
import functools

import jax
import jax.numpy as jnp
from jax.experimental import pallas as pl
from jax.experimental.pallas import tpu as pltpu

_LANE = 128
_SUBLANE_F32 = 8
_SUBLANE_BF16 = 16

# Flipped to False (once) if this jax build rejects pl.Buffered(1) for constant blocks.
_BUFFERED1_OK = True


def _round_up(x: int, m: int) -> int:
    return ((x + m - 1) // m) * m


def _apply_act(h, act_type: int):
    # 1 = Sigmoid, 2 = ReLU, 3 = Tanh (same encoding as the PyTorch module)
    if act_type == 1:
        return jax.nn.sigmoid(h)
    elif act_type == 2:
        return jnp.maximum(h, 0.0)
    elif act_type == 3:
        return jnp.tanh(h)
    else:
        raise ValueError(f"unknown activation type {act_type}")


def _mlp_kernel(x_ref, w1_ref, w2_ref, w3_ref, b_ref, o_ref, *, act1: int, act2: int,
                hid_p: int):
    # Biases live in one concatenated f32 block: [b1 (hid_p) | b2 (hid_p) | b3 (out_dim)].
    # Slice boundaries are 128-lane aligned (hid_p is a multiple of 128).
    b1 = b_ref[:, 0:hid_p]
    b2 = b_ref[:, hid_p:2 * hid_p]
    b3 = b_ref[:, 2 * hid_p:]

    # linear1 + actfun1 (MXU matmul, f32 accumulate; activations on VPU/EUP in f32)
    h = jnp.dot(x_ref[...], w1_ref[...], preferred_element_type=jnp.float32)
    h = _apply_act(h + b1, act1)
    # linear2 + actfun2
    h = jnp.dot(h.astype(w2_ref.dtype), w2_ref[...], preferred_element_type=jnp.float32)
    h = _apply_act(h + b2, act2)
    # predict (output kept at its true width -> HBM writeback is out_dim*4 B/row)
    out = jnp.dot(h.astype(w3_ref.dtype), w3_ref[...], preferred_element_type=jnp.float32)
    o_ref[...] = (out + b3).astype(o_ref.dtype)


def _vmem_budget_and_limit():
    """Generation-aware VMEM numbers: ~96 MiB limit on 128 MiB chips (v5e/v6e),
    ~48 MiB on 64 MiB chips (v7x); conservative 64 MiB capacity if the query fails."""
    cap = 64 * 1024 * 1024
    try:
        info = pltpu.get_tpu_info()
        cap = int(getattr(info, "vmem_capacity_bytes", cap)) or cap
    except Exception:  # query unavailable (e.g. interpret / CPU AOT) -> conservative default
        pass
    limit = min((cap * 3) // 4, 100 * 1024 * 1024)
    budget = (limit * 4) // 5
    return budget, limit


def _auto_bf16(budget: int, w_bytes_f32: int) -> bool:
    """bf16 streaming halves HBM traffic and weight residency.  Enable when resident f32
    weights (double-buffered worst case) would squeeze the x/out pipeline, or on chips with a
    bf16 VPU (v6e/v7x) where the cast overhead is negligible."""
    if 2 * w_bytes_f32 > budget // 2:
        return True
    try:
        name = str(getattr(pltpu.get_tpu_info(), "chip_version", "")).lower()
        return ("v6" in name) or ("v7" in name)
    except Exception:
        return False


def _default_tile_b(budget: int, in_dim: int, hid_p: int, out_dim: int,
                    x_itemsize: int, w_bytes: int, sub: int) -> int:
    """Batch tile: as large as possible (amortize ~0.35 us/step pipeline overhead, approach the
    HBM roofline) while double-buffered x/out tiles + resident weights fit the VMEM budget."""
    # VMEM pads the last dim of every block to 128 lanes.
    per_row = (2 * (_round_up(max(in_dim, _LANE), _LANE) * x_itemsize
                    + _round_up(out_dim, _LANE) * 4)
               + 3 * hid_p * 4)                       # f32 hidden intermediates / scratch
    avail = max(budget - 2 * w_bytes, sub * per_row)  # weights double-buffered worst case
    tile = (avail // per_row) // sub * sub
    return int(max(sub, min(2048, tile)))


@functools.lru_cache(maxsize=None)
def _build_forward(B_pad, tile_b, in_dim, hid_p, out_dim, b_cols, act1, act2,
                   x_itemsize, w_itemsize, single_buffer_weights, vmem_limit):
    kernel = functools.partial(_mlp_kernel, act1=act1, act2=act2, hid_p=hid_p)

    def const_spec(shape):
        # Constant across the grid; optionally single-buffered to halve VMEM residency.
        if single_buffer_weights:
            return pl.BlockSpec(shape, lambda i: (0, 0), pipeline_mode=pl.Buffered(1))
        return pl.BlockSpec(shape, lambda i: (0, 0))

    n_trans = (1 if act1 in (1, 3) else 0) + (1 if act2 in (1, 3) else 0)
    w_bytes = (in_dim * hid_p + hid_p * hid_p + hid_p * out_dim) * w_itemsize + b_cols * 4
    cost = pl.CostEstimate(
        flops=2 * B_pad * (in_dim * hid_p + hid_p * hid_p + hid_p * out_dim),
        transcendentals=B_pad * hid_p * n_trans,
        bytes_accessed=B_pad * in_dim * x_itemsize + B_pad * out_dim * 4 + w_bytes,
    )

    call = pl.pallas_call(
        kernel,
        out_shape=jax.ShapeDtypeStruct((B_pad, out_dim), jnp.float32),
        grid_spec=pltpu.PrefetchScalarGridSpec(
            num_scalar_prefetch=0,
            grid=(B_pad // tile_b,),
            in_specs=[
                pl.BlockSpec((tile_b, in_dim), lambda i: (i, 0)),  # x tile (streamed)
                const_spec((in_dim, hid_p)),                       # w1 (resident)
                const_spec((hid_p, hid_p)),                        # w2 (resident)
                const_spec((hid_p, out_dim)),                      # w3 (resident, true width)
                const_spec((1, b_cols)),                           # [b1 | b2 | b3] (f32)
            ],
            out_specs=pl.BlockSpec((tile_b, out_dim), lambda i: (i, 0)),
        ),
        compiler_params=pltpu.CompilerParams(
            dimension_semantics=("parallel",),   # batch tiles shard across TCs on v7x
            vmem_limit_bytes=int(vmem_limit),
        ),
        cost_estimate=cost,
    )
    return jax.jit(call)


def neural_network_forward(x, params, *, act1: int, act2: int,
                           tile_b: int | None = None, use_bf16: bool | None = None):
    """Pallas forward pass of Neural_Network_Class.

    x: (B, input_size) float32
    params: dict with w1 (in,hid), b1 (1,hid), w2 (hid,hid), b2 (1,hid), w3 (hid,out), b3 (1,out)
    use_bf16=None -> auto (chip generation / VMEM pressure); outputs are always f32.
    """
    global _BUFFERED1_OK

    w1, b1 = params["w1"], params["b1"]
    w2, b2 = params["w2"], params["b2"]
    w3, b3 = params["w3"], params["b3"]

    B, in_dim = x.shape
    hid = w1.shape[1]
    out_dim = w3.shape[1]

    # ---- host-side feature padding -------------------------------------------------------
    # Hidden dim is padded to a 128-lane multiple (lane-dense matmuls).  Padded hidden units
    # have zero weights/bias, and the corresponding ROWS of the next weight matrix are zero,
    # so act(0) on padded lanes never reaches a real output (keep this invariant!).
    # The output dim is NOT padded: writeback stays out_dim*4 B/row.
    hid_p = _round_up(hid, _LANE)

    def pad2(a, r, c):
        return a if a.shape == (r, c) else jnp.pad(a, ((0, r - a.shape[0]), (0, c - a.shape[1])))

    w1_p = pad2(w1, in_dim, hid_p)
    w2_p = pad2(w2, hid_p, hid_p)
    w3_p = pad2(w3, hid_p, out_dim)
    # Biases stay f32 (tiny; keeps the adds/activations in f32 even on the bf16 path) and are
    # concatenated into a single constant input (fewer DMA descriptors per grid step).
    b_all = jnp.concatenate(
        [pad2(b1, 1, hid_p), pad2(b2, 1, hid_p), b3.reshape(1, out_dim)], axis=1
    ).astype(jnp.float32)
    b_cols = int(b_all.shape[1])

    budget, vmem_limit = _vmem_budget_and_limit()
    w_bytes_f32 = 4 * (in_dim * hid_p + hid_p * hid_p + hid_p * out_dim) + 4 * b_cols
    if use_bf16 is None:
        use_bf16 = _auto_bf16(budget, w_bytes_f32)

    if use_bf16:
        # bf16 MXU inputs (halves streamed-x HBM bytes + resident weight VMEM);
        # f32 accumulate and f32 activation/bias math (safe on v5e: no bf16 VPU/EUP needed).
        x = x.astype(jnp.bfloat16)
        w1_p, w2_p, w3_p = (w.astype(jnp.bfloat16) for w in (w1_p, w2_p, w3_p))

    x_itemsize = int(jnp.dtype(x.dtype).itemsize)
    w_itemsize = int(jnp.dtype(w1_p.dtype).itemsize)
    w_bytes = (in_dim * hid_p + hid_p * hid_p + hid_p * out_dim) * w_itemsize + 4 * b_cols
    sub = _SUBLANE_BF16 if use_bf16 else _SUBLANE_F32   # bf16 min tile is (16, 128)

    # ---- batch tiling ---------------------------------------------------------------------
    if tile_b is None:
        tile_b = _default_tile_b(budget, in_dim, hid_p, out_dim, x_itemsize, w_bytes, sub)
        # Keep >= 2 grid steps when the batch allows it so v7x's two TensorCores both work.
        B_r = _round_up(B, sub)
        if B_r >= 2 * sub:
            tile_b = min(tile_b, _round_up(pl.cdiv(B_r, 2), sub))
    tile_b = max(sub, _round_up(min(int(tile_b), _round_up(B, sub)), sub))
    B_pad = _round_up(B, tile_b)
    x_p = pad2(x, B_pad, in_dim)

    # Single-buffer the resident weights only when they are big enough to matter (large hidden
    # sizes on v7x's 64 MiB VMEM); tiny weights keep the default (never exercises the fallback).
    single_buffer = (2 * w_bytes > budget // 4)
    # TODO(synk): for hidden sizes where even bf16 single-buffered weights exceed VMEM, add a
    # hidden-dim grid axis with a VMEM accumulator instead of keeping all weights resident.

    args = (x_p, w1_p, w2_p, w3_p, b_all)
    key = (B_pad, tile_b, in_dim, hid_p, out_dim, b_cols, act1, act2,
           x_itemsize, w_itemsize)

    if single_buffer and _BUFFERED1_OK:
        try:
            out_pad = _build_forward(*key, True, vmem_limit)(*args)
        except (TypeError, NotImplementedError, pltpu.LoweringException):
            # This jax build rejects pl.Buffered(1): remember that and fall back once.
            _BUFFERED1_OK = False
            out_pad = _build_forward(*key, False, vmem_limit)(*args)
    else:
        out_pad = _build_forward(*key, False, vmem_limit)(*args)

    return out_pad[:B, :out_dim]


def init_params(key, input_size, hidden_size, output_size, dtype=jnp.float32):
    """Deterministic init matching nn.Linear shapes (weights pre-transposed to (in,out))."""
    ks = jax.random.split(key, 6)

    def uniform_linear(kw, kb, fan_in, shape_w, shape_b):
        bound = 1.0 / jnp.sqrt(fan_in)
        w = jax.random.uniform(kw, shape_w, dtype, -bound, bound)
        b = jax.random.uniform(kb, shape_b, dtype, -bound, bound)
        return w, b

    w1, b1 = uniform_linear(ks[0], ks[1], input_size,
                            (input_size, hidden_size), (1, hidden_size))
    w2, b2 = uniform_linear(ks[2], ks[3], hidden_size,
                            (hidden_size, hidden_size), (1, hidden_size))
    w3, b3 = uniform_linear(ks[4], ks[5], hidden_size,
                            (hidden_size, output_size), (1, output_size))
    return {"w1": w1, "b1": b1, "w2": w2, "b2": b2, "w3": w3, "b3": b3}


def reference_forward(x, params, act1, act2):
    h = x @ params["w1"] + params["b1"]
    h = _apply_act(h, act1)
    h = h @ params["w2"] + params["b2"]
    h = _apply_act(h, act2)
    return h @ params["w3"] + params["b3"]


if __name__ == "__main__":
    # Small shapes consistent with the module's forward (pure MLP on (batch, features)).
    batch = 8
    input_size = 16
    hidden_size = 32
    output_size = 8

    key = jax.random.PRNGKey(0)
    kx, kx2, kp = jax.random.split(key, 3)
    x = jax.random.normal(kx, (batch, input_size), dtype=jnp.float32)
    params = init_params(kp, input_size, hidden_size, output_size)

    # 1) f32 path, ReLU + Tanh, single grid step.
    out = neural_network_forward(x, params, act1=2, act2=3, use_bf16=False)
    out = jax.block_until_ready(out)
    ref = reference_forward(x, params, 2, 3)
    assert out.shape == (batch, output_size)
    assert jnp.allclose(out, ref, atol=1e-5, rtol=1e-5), "mismatch vs JAX reference"

    # 2) Ragged batch + explicit tiling (grid > 1) + Sigmoid first activation
    #    (exercises the padded-hidden / padded-batch path and multi-step pipeline).
    x2 = jax.random.normal(kx2, (20, input_size), dtype=jnp.float32)
    out2 = neural_network_forward(x2, params, act1=1, act2=3, tile_b=8, use_bf16=False)
    out2 = jax.block_until_ready(out2)
    ref2 = reference_forward(x2, params, 1, 3)
    assert out2.shape == (20, output_size)
    assert jnp.allclose(out2, ref2, atol=1e-5, rtol=1e-5), "mismatch vs JAX reference (tiled)"

    # 3) bf16 streaming path (f32 accumulate), 16-row sublane rounding, 2-step auto grid.
    #    Looser tolerance: inputs/weights are bf16 on this path.
    out3 = neural_network_forward(x2, params, act1=2, act2=1, use_bf16=True)
    out3 = jax.block_until_ready(out3)
    ref3 = reference_forward(x2, params, 2, 1)
    assert out3.shape == (20, output_size)
    assert jnp.allclose(out3, ref3, atol=1e-1, rtol=1e-1), "mismatch vs JAX reference (bf16)"

    print("KERNEL_OK")
</pallas_src>

<mosaic_0001>
module attributes {stable_mosaic.version = 11 : i64} {
  func.func @_mlp_kernel(%arg0: i32, %arg1: memref<8x16xf32, #tpu.memory_space<vmem>>, %arg2: memref<16x128xf32, #tpu.memory_space<vmem>>, %arg3: memref<128x128xf32, #tpu.memory_space<vmem>>, %arg4: memref<128x8xf32, #tpu.memory_space<vmem>>, %arg5: memref<1x264xf32, #tpu.memory_space<vmem>>, %arg6: memref<8x8xf32, #tpu.memory_space<vmem>>) attributes {dimension_semantics = [#tpu.dimension_semantics<parallel>], iteration_bounds = array<i64: 1>, scalar_prefetch = 0 : i64, scratch_operands = 0 : i64, tpu.core_type = #tpu.core_type<tc>, window_params = [{transform_indices = @transform_0, window_bounds = array<i64: 8, 16>}, {pipeline_mode = #tpu.pipeline_mode<synchronous>, transform_indices = @transform_1, window_bounds = array<i64: 16, 128>}, {pipeline_mode = #tpu.pipeline_mode<synchronous>, transform_indices = @transform_2, window_bounds = array<i64: 128, 128>}, {pipeline_mode = #tpu.pipeline_mode<synchronous>, transform_indices = @transform_3, window_bounds = array<i64: 128, 8>}, {pipeline_mode = #tpu.pipeline_mode<synchronous>, transform_indices = @transform_4, window_bounds = array<i64: 1, 264>}, {transform_indices = @transform_5, window_bounds = array<i64: 8, 8>}]} {
    %c0 = arith.constant 0 : index
    %c0_0 = arith.constant 0 : index
    %0 = vector.load %arg5[%c0, %c0_0] : memref<1x264xf32, #tpu.memory_space<vmem>>, vector<1x128xf32>
    %c0_1 = arith.constant 0 : index
    %c128 = arith.constant 128 : index
    %1 = vector.load %arg5[%c0_1, %c128] : memref<1x264xf32, #tpu.memory_space<vmem>>, vector<1x128xf32>
    %c0_2 = arith.constant 0 : index
    %c256 = arith.constant 256 : index
    %2 = vector.load %arg5[%c0_2, %c256] : memref<1x264xf32, #tpu.memory_space<vmem>>, vector<1x8xf32>
    %c0_3 = arith.constant 0 : index
    %c0_4 = arith.constant 0 : index
    %3 = vector.load %arg1[%c0_3, %c0_4] : memref<8x16xf32, #tpu.memory_space<vmem>>, vector<8x16xf32>
    %c0_5 = arith.constant 0 : index
    %c0_6 = arith.constant 0 : index
    %4 = vector.load %arg2[%c0_5, %c0_6] : memref<16x128xf32, #tpu.memory_space<vmem>>, vector<16x128xf32>
    %cst = arith.constant dense<0.000000e+00> : vector<8x128xf32>
    %5 = tpu.matmul %3, %4, %cst {dimension_numbers = #tpu.dot_dimension_numbers<[1], [0], [0], [1], [0, 0, 1, 1], [], []>} : vector<8x16xf32>, vector<16x128xf32>, vector<8x128xf32> -> vector<8x128xf32>
    %6 = vector.broadcast %0 : vector<1x128xf32> to vector<8x128xf32>
    %7 = arith.addf %5, %6 : vector<8x128xf32>
    %cst_7 = arith.constant 0.000000e+00 : f32
    %8 = vector.broadcast %cst_7 : f32 to vector<8x128xf32>
    %9 = arith.maximumf %7, %8 : vector<8x128xf32>
    %c0_8 = arith.constant 0 : index
    %c0_9 = arith.constant 0 : index
    %10 = vector.load %arg3[%c0_8, %c0_9] : memref<128x128xf32, #tpu.memory_space<vmem>>, vector<128x128xf32>
    %cst_10 = arith.constant dense<0.000000e+00> : vector<8x128xf32>
    %11 = tpu.matmul %9, %10, %cst_10 {dimension_numbers = #tpu.dot_dimension_numbers<[1], [0], [0], [1], [0, 0, 1, 1], [], []>} : vector<8x128xf32>, vector<128x128xf32>, vector<8x128xf32> -> vector<8x128xf32>
    %12 = vector.broadcast %1 : vector<1x128xf32> to vector<8x128xf32>
    %13 = arith.addf %11, %12 : vector<8x128xf32>
    %14 = math.tanh %13 : vector<8x128xf32>
    %c0_11 = arith.constant 0 : index
    %c0_12 = arith.constant 0 : index
    %15 = vector.load %arg4[%c0_11, %c0_12] : memref<128x8xf32, #tpu.memory_space<vmem>>, vector<128x8xf32>
    %cst_13 = arith.constant dense<0.000000e+00> : vector<8x8xf32>
    %16 = tpu.matmul %14, %15, %cst_13 {dimension_numbers = #tpu.dot_dimension_numbers<[1], [0], [0], [1], [0, 0, 1, 1], [], []>} : vector<8x128xf32>, vector<128x8xf32>, vector<8x8xf32> -> vector<8x8xf32>
    %17 = vector.broadcast %2 : vector<1x8xf32> to vector<8x8xf32>
    %18 = arith.addf %16, %17 : vector<8x8xf32>
    %c0_14 = arith.constant 0 : index
    %c0_15 = arith.constant 0 : index
    %19 = vector.load %arg6[%c0_14, %c0_15] : memref<8x8xf32, #tpu.memory_space<vmem>>, vector<8x8xf32>
    tpu.vector_store %arg6[%c0_14, %c0_15], %18 {strides = array<i32>} : memref<8x8xf32, #tpu.memory_space<vmem>>, vector<8x8xf32>,
    return
  }
  func.func @transform_0(%arg0: i32) -> (i32, i32) {
    %c0_i32 = arith.constant 0 : i32
    %c0_i32_0 = arith.constant 0 : i32
    return %arg0, %c0_i32 : i32, i32
  }
  func.func @transform_1(%arg0: i32) -> (i32, i32) {
    %c0_i32 = arith.constant 0 : i32
    %c0_i32_0 = arith.constant 0 : i32
    %c0_i32_1 = arith.constant 0 : i32
    return %c0_i32, %c0_i32_0 : i32, i32
  }
  func.func @transform_2(%arg0: i32) -> (i32, i32) {
    %c0_i32 = arith.constant 0 : i32
    %c0_i32_0 = arith.constant 0 : i32
    %c0_i32_1 = arith.constant 0 : i32
    return %c0_i32, %c0_i32_0 : i32, i32
  }
  func.func @transform_3(%arg0: i32) -> (i32, i32) {
    %c0_i32 = arith.constant 0 : i32
    %c0_i32_0 = arith.constant 0 : i32
    %c0_i32_1 = arith.constant 0 : i32
    return %c0_i32, %c0_i32_0 : i32, i32
  }
  func.func @transform_4(%arg0: i32) -> (i32, i32) {
    %c0_i32 = arith.constant 0 : i32
    %c0_i32_0 = arith.constant 0 : i32
    %c0_i32_1 = arith.constant 0 : i32
    return %c0_i32, %c0_i32_0 : i32, i32
  }
  func.func @transform_5(%arg0: i32) -> (i32, i32) {
    %c0_i32 = arith.constant 0 : i32
    %c0_i32_0 = arith.constant 0 : i32
    return %arg0, %c0_i32 : i32, i32
  }
}

</mosaic_0001>

<llo_original>
// kernel: tpu_custom_call.1
$region0: #{tpu_custom_call.1}
  #allocation0 [shape = 'u32[]', space=smem, size = 0x4, offset = 0x4, fixed_abs, tag = 'smem constant byte address 0x4 - core index']
  #allocation1 [shape = 'u32[144,128]{1,0:T(1,128)}', space=vmem, size = 0x12000, scoped, tag = 'internal scratch']
  %s0 = inlined_call_operand.vmem [shape: f32[8,16], index: 0, kind: input, shape index: {}]
  %s1 = inlined_call_operand.hbm [shape: f32[16,128], index: 1, kind: input, shape index: {}]
  %s2 = inlined_call_operand.vmem [shape: f32[128,128], index: 2, kind: input, shape index: {}]
  %s3 = inlined_call_operand.vmem [shape: f32[128,8], index: 3, kind: input, shape index: {}]
  %s4 = inlined_call_operand.vmem [shape: f32[1,264], index: 4, kind: input, shape index: {}]
  %s5 = inlined_call_operand.hbm [shape: f32[8,8], index: 5, kind: output, shape index: {}]
  %s6 = sld [smem:[#allocation0]]
  $region34: #{tpu_custom_call.1} parent=0
    _
  %s8 = ssub.s32 1, %s6
  %s9 = scalar_select 0, %s8, %s6
  $region1: #{tpu_custom_call.1} parent=0
    #allocation2 [shape = 'u8[8192]{0}', space=vmem, size = 0x2000, scoped, tag = 'input window, operand 1, single buffered']
    #allocation3 [shape = 's32[1]{0}', space=sflag, size = 0x4, scoped, tag = 'scoped memory for tpu_custom_call.1']
    #allocation4 [shape = 's32[1]{0}', space=sflag, size = 0x4, scoped, tag = 'scoped memory for tpu_custom_call.1']
    #allocation5 [shape = 'u8[4096]{0}', space=vmem, size = 0x1000, scoped, tag = 'output window, operand 0, single buffered']
    %10 = vsyncpa [#allocation3], 0
    %11 = vsyncpa [#allocation4], 0
    // Predicated region
    $region2: #{tpu_custom_call.1} parent=1 // pred_check
      _
    $region3: #{tpu_custom_call.1} parent=1 // pred_check_branch
      %13 = sbr.rel (0) target = $region5
    $region4: #{tpu_custom_call.1} parent=1 // pred_region
      _
    $region5: #{tpu_custom_call.1} parent=1 // pred_fallthru
      _
    // Predicated region
    $region6: #{tpu_custom_call.1} parent=1 // pred_check
      _
    $region7: #{tpu_custom_call.1} parent=1 // pred_check_branch
      %15 = sbr.rel (0) target = $region9
    $region8: #{tpu_custom_call.1} parent=1 // pred_region
      %s17 = ssub.s32 256, 256
      %18 = vsyncadd [#allocation3], %s17
      %s19 = sshll.u32 [#allocation2], 4
      %s20 = int_to_ptr.vmem [resolvable:$true] %s19
      %25 = dma.hbm_to_vmem [thread:$0]  %s1, 256, %s20, [#allocation3], 128, 128, 8
    $region9: #{tpu_custom_call.1} parent=1 // pred_fallthru
      _
    // Predicated region
    $region10: #{tpu_custom_call.1} parent=1 // pred_check
      _
    $region11: #{tpu_custom_call.1} parent=1 // pred_check_branch
      %27 = sbr.rel (0) target = $region13
    $region12: #{tpu_custom_call.1} parent=1 // pred_region
      _
    $region13: #{tpu_custom_call.1} parent=1 // pred_fallthru
      _
    // Predicated region
    $region14: #{tpu_custom_call.1} parent=1 // pred_check
      _
    $region15: #{tpu_custom_call.1} parent=1 // pred_check_branch
      %29 = sbr.rel (0) target = $region17
    $region16: #{tpu_custom_call.1} parent=1 // pred_region
      _
    $region17: #{tpu_custom_call.1} parent=1 // pred_fallthru
      _
    // Predicated region
    $region18: #{tpu_custom_call.1} parent=1 // pred_check
      _
    $region19: #{tpu_custom_call.1} parent=1 // pred_check_branch
      %31 = sbr.rel (0) target = $region21
    $region20: #{tpu_custom_call.1} parent=1 // pred_region
      _
    $region21: #{tpu_custom_call.1} parent=1 // pred_fallthru
      _
    // Predicated region
    $region22: #{tpu_custom_call.1} parent=1 // pred_check
      _
    $region23: #{tpu_custom_call.1} parent=1 // pred_check_branch
      %33 = sbr.rel (0) target = $region25
    $region24: #{tpu_custom_call.1} parent=1 // pred_region
      %34 = dma.done [#allocation3], 256
    $region25: #{tpu_custom_call.1} parent=1 // pred_fallthru
      _
    %v35 = vld [vmem:[%s4] sm:$0x1]
    %v36 = vld [vmem:[%s4 + $0x1] sm:$0x1]
    %v37 = vld [vmem:[%s4 + $0x2] sm:$0x1]
    %v38 = vld [vmem:[%s0] sm:$0xff]
    %v39 = vld [vmem:[#allocation2] sm:$0xff]
    %v40 = vld [vmem:[#allocation2 + $0x8] sm:$0xff]
    %v42 = vlaneseq
    %v43 = vshrl.u32 %v42, 7
    %v44 = vsub.s32 0, %v43
    %v45 = vrot.slane %v35, %v44
    %vm47 = vcmask 130048
    %v49 = vsel %vm47, %v38, 0
    %51 = vmatprep.subr.mxu0 0.0
    %52 = vmatpush1.msra.mxu0 %v39
    %53 = vmatprep.subr.mxu0 0.0
    %54 = vmatpush1.msra.mxu0 %v40
    %55 = vmatprep.subr.mxu0 0.0
    %56 = vmatpush1.msra.mxu0 0.0
    %57 = vmatprep.subr.mxu0 0.0
    %58 = vmatpush1.msra.mxu0 0.0
    %59 = vmatprep.subr.mxu0 0.0
    %60 = vmatpush1.msra.mxu0 0.0
    %61 = vmatprep.subr.mxu0 0.0
    %62 = vmatpush1.msra.mxu0 0.0
    %63 = vmatprep.subr.mxu0 0.0
    %64 = vmatpush1.msra.mxu0 0.0
    %65 = vmatprep.subr.mxu0 0.0
    %66 = vmatpush1.msra.mxu0 0.0
    %67 = vmatprep.subr.mxu0 0.0
    %68 = vmatpush1.msra.mxu0 0.0
    %69 = vmatprep.subr.mxu0 0.0
    %70 = vmatpush1.msra.mxu0 0.0
    %71 = vmatprep.subr.mxu0 0.0
    %72 = vmatpush1.msra.mxu0 0.0
    %73 = vmatprep.subr.mxu0 0.0
    %74 = vmatpush1.msra.mxu0 0.0
    %75 = vmatprep.subr.mxu0 0.0
    %76 = vmatpush1.msra.mxu0 0.0
    %77 = vmatprep.subr.mxu0 0.0
    %78 = vmatpush1.msra.mxu0 0.0
    %79 = vmatprep.subr.mxu0 0.0
    %80 = vmatpush1.msra.mxu0 0.0
    %81 = vmatprep.subr.mxu0 0.0
    %82 = vmatpush1.msra.mxu0 0.0
    %83 = vmatprep.subr.mxu0 0.0
    %84 = vmatpush1.msra.mxu0 0.0
    %85 = vmatprep.subr.mxu0 0.0
    %86 = vmatpush1.msra.mxu0 0.0
    %87 = vmatprep.subr.mxu0 0.0
    %88 = vmatpush1.msra.mxu0 0.0
    %89 = vmatprep.subr.mxu0 0.0
    %90 = vmatpush1.msra.mxu0 0.0
    %91 = vmatprep.subr.mxu0 0.0
    %92 = vmatpush1.msra.mxu0 0.0
    %93 = vmatprep.subr.mxu0 0.0
    %94 = vmatpush1.msra.mxu0 0.0
    %95 = vmatprep.subr.mxu0 0.0
    %96 = vmatpush1.msra.mxu0 0.0
    %97 = vmatprep.subr.mxu0 0.0
    %98 = vmatpush1.msra.mxu0 0.0
    %99 = vmatprep.subr.mxu0 0.0
    %100 = vmatpush1.msra.mxu0 0.0
    %101 = vmatprep.subr.mxu0 0.0
    %102 = vmatpush1.msra.mxu0 0.0
    %103 = vmatprep.subr.mxu0 0.0
    %104 = vmatpush1.msra.mxu0 0.0
    %105 = vmatprep.subr.mxu0 0.0
    %106 = vmatpush1.msra.mxu0 0.0
    %107 = vmatprep.subr.mxu0 0.0
    %108 = vmatpush1.msra.mxu0 0.0
    %109 = vmatprep.subr.mxu0 0.0
    %110 = vmatpush1.msra.mxu0 0.0
    %111 = vmatprep.subr.mxu0 0.0
    %112 = vmatpush1.msra.mxu0 0.0
    %113 = vmatprep.subr.mxu0 0.0
    %114 = vmatpush1.msra.mxu0 0.0
    %115 = vmatprep.mubr.f32.mxu0 0.0
    %116 = vmatmul.mubr.f32.gmra.mrb[0].mxu0 %v49
    %v117 = vpop.f32.mrb[0].mxu0
    %v118 = vadd.f32 %v45, %v117
    %v119 = vpop.f32.mrb[0].mxu0
    %120 = vdwg.mxu0
    %v121 = vmax.f32 %v118, 0.0
    %v122 = vld [vmem:[%s2] sm:$0xff]
    %v123 = vld [vmem:[%s2 + $0x8] sm:$0xff]
    %v124 = vld [vmem:[%s2 + $0x10] sm:$0xff]
    %v125 = vld [vmem:[%s2 + $0x18] sm:$0xff]
    %v126 = vld [vmem:[%s2 + $0x20] sm:$0xff]
    %v127 = vld [vmem:[%s2 + $0x28] sm:$0xff]
    %v128 = vld [vmem:[%s2 + $0x30] sm:$0xff]
    %v129 = vld [vmem:[%s2 + $0x38] sm:$0xff]
    %v130 = vld [vmem:[%s2 + $0x40] sm:$0xff]
    %v131 = vld [vmem:[%s2 + $0x48] sm:$0xff]
    %v132 = vld [vmem:[%s2 + $0x50] sm:$0xff]
    %v133 = vld [vmem:[%s2 + $0x58] sm:$0xff]
    %v134 = vld [vmem:[%s2 + $0x60] sm:$0xff]
    %v135 = vld [vmem:[%s2 + $0x68] sm:$0xff]
    %v136 = vld [vmem:[%s2 + $0x70] sm:$0xff]
    %v137 = vld [vmem:[%s2 + $0x78] sm:$0xff]
    %v139 = vlaneseq
    %v140 = vshrl.u32 %v139, 7
    %v141 = vsub.s32 0, %v140
    %v142 = vrot.slane %v36, %v141
    %144 = vmatprep.subr.mxu0 0.0
    %145 = vmatpush1.msra.mxu0 %v122
    %146 = vmatprep.subr.mxu0 0.0
    %147 = vmatpush1.msra.mxu0 %v123
    %148 = vmatprep.subr.mxu0 0.0
    %149 = vmatpush1.msra.mxu0 %v124
    %150 = vmatprep.subr.mxu0 0.0
    %151 = vmatpush1.msra.mxu0 %v125
    %152 = vmatprep.subr.mxu0 0.0
    %153 = vmatpush1.msra.mxu0 %v126
    %154 = vmatprep.subr.mxu0 0.0
    %155 = vmatpush1.msra.mxu0 %v127
    %156 = vmatprep.subr.mxu0 0.0
    %157 = vmatpush1.msra.mxu0 %v128
    %158 = vmatprep.subr.mxu0 0.0
    %159 = vmatpush1.msra.mxu0 %v129
    %160 = vmatprep.subr.mxu0 0.0
    %161 = vmatpush1.msra.mxu0 %v130
    %162 = vmatprep.subr.mxu0 0.0
    %163 = vmatpush1.msra.mxu0 %v131
    %164 = vmatprep.subr.mxu0 0.0
    %165 = vmatpush1.msra.mxu0 %v132
    %166 = vmatprep.subr.mxu0 0.0
    %167 = vmatpush1.msra.mxu0 %v133
    %168 = vmatprep.subr.mxu0 0.0
    %169 = vmatpush1.msra.mxu0 %v134
    %170 = vmatprep.subr.mxu0 0.0
    %171 = vmatpush1.msra.mxu0 %v135
    %172 = vmatprep.subr.mxu0 0.0
    %173 = vmatpush1.msra.mxu0 %v136
    %174 = vmatprep.subr.mxu0 0.0
    %175 = vmatpush1.msra.mxu0 %v137
    %176 = vmatprep.subr.mxu0 0.0
    %177 = vmatpush1.msra.mxu0 0.0
    %178 = vmatprep.subr.mxu0 0.0
    %179 = vmatpush1.msra.mxu0 0.0
    %180 = vmatprep.subr.mxu0 0.0
    %181 = vmatpush1.msra.mxu0 0.0
    %182 = vmatprep.subr.mxu0 0.0
    %183 = vmatpush1.msra.mxu0 0.0
    %184 = vmatprep.subr.mxu0 0.0
    %185 = vmatpush1.msra.mxu0 0.0
    %186 = vmatprep.subr.mxu0 0.0
    %187 = vmatpush1.msra.mxu0 0.0
    %188 = vmatprep.subr.mxu0 0.0
    %189 = vmatpush1.msra.mxu0 0.0
    %190 = vmatprep.subr.mxu0 0.0
    %191 = vmatpush1.msra.mxu0 0.0
    %192 = vmatprep.subr.mxu0 0.0
    %193 = vmatpush1.msra.mxu0 0.0
    %194 = vmatprep.subr.mxu0 0.0
    %195 = vmatpush1.msra.mxu0 0.0
    %196 = vmatprep.subr.mxu0 0.0
    %197 = vmatpush1.msra.mxu0 0.0
    %198 = vmatprep.subr.mxu0 0.0
    %199 = vmatpush1.msra.mxu0 0.0
    %200 = vmatprep.subr.mxu0 0.0
    %201 = vmatpush1.msra.mxu0 0.0
    %202 = vmatprep.subr.mxu0 0.0
    %203 = vmatpush1.msra.mxu0 0.0
    %204 = vmatprep.subr.mxu0 0.0
    %205 = vmatpush1.msra.mxu0 0.0
    %206 = vmatprep.subr.mxu0 0.0
    %207 = vmatpush1.msra.mxu0 0.0
    %208 = vmatprep.mubr.f32.mxu0 0.0
    %209 = vmatmul.mubr.f32.gmra.mrb[0].mxu0 %v121
    %v210 = vpop.f32.mrb[0].mxu0
    %v211 = vadd.f32 %v142, %v210
    %v212 = vpop.f32.mrb[0].mxu0
    %213 = vdwg.mxu0
    %v214 = vtanh.pop %v211
    %v215 = vld [vmem:[%s3] sm:$0xff]
    %v216 = vld [vmem:[%s3 + $0x8] sm:$0xff]
    %v217 = vld [vmem:[%s3 + $0x10] sm:$0xff]
    %v218 = vld [vmem:[%s3 + $0x18] sm:$0xff]
    %v219 = vld [vmem:[%s3 + $0x20] sm:$0xff]
    %v220 = vld [vmem:[%s3 + $0x28] sm:$0xff]
    %v221 = vld [vmem:[%s3 + $0x30] sm:$0xff]
    %v222 = vld [vmem:[%s3 + $0x38] sm:$0xff]
    %v223 = vld [vmem:[%s3 + $0x40] sm:$0xff]
    %v224 = vld [vmem:[%s3 + $0x48] sm:$0xff]
    %v225 = vld [vmem:[%s3 + $0x50] sm:$0xff]
    %v226 = vld [vmem:[%s3 + $0x58] sm:$0xff]
    %v227 = vld [vmem:[%s3 + $0x60] sm:$0xff]
    %v228 = vld [vmem:[%s3 + $0x68] sm:$0xff]
    %v229 = vld [vmem:[%s3 + $0x70] sm:$0xff]
    %v230 = vld [vmem:[%s3 + $0x78] sm:$0xff]
    %v232 = vlaneseq
    %v233 = vshrl.u32 %v232, 7
    %v234 = vsub.s32 0, %v233
    %v235 = vrot.slane %v37, %v234
    %237 = vmatprep.subr.mxu0 0.0
    %238 = vmatpush1.msra.mxu0 %v215
    %239 = vmatprep.subr.mxu0 0.0
    %240 = vmatpush1.msra.mxu0 %v216
    %241 = vmatprep.subr.mxu0 0.0
    %242 = vmatpush1.msra.mxu0 %v217
    %243 = vmatprep.subr.mxu0 0.0
    %244 = vmatpush1.msra.mxu0 %v218
    %245 = vmatprep.subr.mxu0 0.0
    %246 = vmatpush1.msra.mxu0 %v219
    %247 = vmatprep.subr.mxu0 0.0
    %248 = vmatpush1.msra.mxu0 %v220
    %249 = vmatprep.subr.mxu0 0.0
    %250 = vmatpush1.msra.mxu0 %v221
    %251 = vmatprep.subr.mxu0 0.0
    %252 = vmatpush1.msra.mxu0 %v222
    %253 = vmatprep.subr.mxu0 0.0
    %254 = vmatpush1.msra.mxu0 %v223
    %255 = vmatprep.subr.mxu0 0.0
    %256 = vmatpush1.msra.mxu0 %v224
    %257 = vmatprep.subr.mxu0 0.0
    %258 = vmatpush1.msra.mxu0 %v225
    %259 = vmatprep.subr.mxu0 0.0
    %260 = vmatpush1.msra.mxu0 %v226
    %261 = vmatprep.subr.mxu0 0.0
    %262 = vmatpush1.msra.mxu0 %v227
    %263 = vmatprep.subr.mxu0 0.0
    %264 = vmatpush1.msra.mxu0 %v228
    %265 = vmatprep.subr.mxu0 0.0
    %266 = vmatpush1.msra.mxu0 %v229
    %267 = vmatprep.subr.mxu0 0.0
    %268 = vmatpush1.msra.mxu0 %v230
    %269 = vmatprep.subr.mxu0 0.0
    %270 = vmatpush1.msra.mxu0 0.0
    %271 = vmatprep.subr.mxu0 0.0
    %272 = vmatpush1.msra.mxu0 0.0
    %273 = vmatprep.subr.mxu0 0.0
    %274 = vmatpush1.msra.mxu0 0.0
    %275 = vmatprep.subr.mxu0 0.0
    %276 = vmatpush1.msra.mxu0 0.0
    %277 = vmatprep.subr.mxu0 0.0
    %278 = vmatpush1.msra.mxu0 0.0
    %279 = vmatprep.subr.mxu0 0.0
    %280 = vmatpush1.msra.mxu0 0.0
    %281 = vmatprep.subr.mxu0 0.0
    %282 = vmatpush1.msra.mxu0 0.0
    %283 = vmatprep.subr.mxu0 0.0
    %284 = vmatpush1.msra.mxu0 0.0
    %285 = vmatprep.subr.mxu0 0.0
    %286 = vmatpush1.msra.mxu0 0.0
    %287 = vmatprep.subr.mxu0 0.0
    %288 = vmatpush1.msra.mxu0 0.0
    %289 = vmatprep.subr.mxu0 0.0
    %290 = vmatpush1.msra.mxu0 0.0
    %291 = vmatprep.subr.mxu0 0.0
    %292 = vmatpush1.msra.mxu0 0.0
    %293 = vmatprep.subr.mxu0 0.0
    %294 = vmatpush1.msra.mxu0 0.0
    %295 = vmatprep.subr.mxu0 0.0
    %296 = vmatpush1.msra.mxu0 0.0
    %297 = vmatprep.subr.mxu0 0.0
    %298 = vmatpush1.msra.mxu0 0.0
    %299 = vmatprep.subr.mxu0 0.0
    %300 = vmatpush1.msra.mxu0 0.0
    %301 = vmatprep.mubr.f32.mxu0 0.0
    %302 = vmatmul.mubr.f32.gmra.mrb[0].mxu0 %v214
    %v303 = vpop.f32.mrb[0].mxu0
    %v304 = vadd.f32 %v235, %v303
    %v305 = vpop.f32.mrb[0].mxu0
    %306 = vdwg.mxu0
    %vm307 = vcmask 64512
    %308 = vst.msk [vmem:[#allocation5] sm:$0xff] %vm307, %v304
    // Predicated region
    $region26: #{tpu_custom_call.1} parent=1 // pred_check
      _
    $region27: #{tpu_custom_call.1} parent=1 // pred_check_branch
      %310 = sbr.rel (0) target = $region29
    $region28: #{tpu_custom_call.1} parent=1 // pred_region
      %s312 = ssub.s32 128, 128
      %313 = vsyncadd [#allocation4], %s312
      %s315 = sshll.u32 [#allocation5], 4
      %s316 = int_to_ptr.vmem [resolvable:$true] %s315
      %318 = dma.vmem_to_hbm [thread:$0]  %s316, 128, %s5, [#allocation4]
    $region29: #{tpu_custom_call.1} parent=1 // pred_fallthru
      _
    // Predicated region
    $region30: #{tpu_custom_call.1} parent=1 // pred_check
      _
    $region31: #{tpu_custom_call.1} parent=1 // pred_check_branch
      %320 = sbr.rel (0) target = $region33
    $region32: #{tpu_custom_call.1} parent=1 // pred_region
      %321 = dma.done [#allocation4], 128
    $region33: #{tpu_custom_call.1} parent=1 // pred_fallthru
      _
    %322 = vsyncpa [#allocation3], 1
    %323 = vsyncpa [#allocation4], 1

</llo_original>
